<compile_context>
chip_gen: v7x
topology: tpu7x:2x2x1
jax: 0.10.0
libtpu: 0.0.40
codegen_flags: <defaults>
</compile_context>

<pallas_src>
import functools

import jax
import jax.numpy as jnp
import numpy as np
from jax.experimental import pallas as pl
from jax.experimental.pallas import tpu as pltpu

TEMPERATURE = 0.07                      # SimCLR default used in info_nce_loss
INV_T = 1.0 / TEMPERATURE
INV_SQRT_T = 1.0 / float(np.sqrt(TEMPERATURE))


def _round_up(x, m):
    return (x + m - 1) // m * m


# ----------------------------------------------------------------------------
# Kernel A: projector Linear + L2 normalize (+ fold 1/sqrt(T))
# ----------------------------------------------------------------------------
def _project_normalize_kernel(z_ref, w_ref, b_ref, h_ref):
    z = z_ref[...]                                            # (BR, Hp) f32
    h = jnp.dot(z, w_ref[...], preferred_element_type=jnp.float32) + b_ref[...]
    ss = jnp.sum(h * h, axis=-1, keepdims=True)               # (BR, 1)
    # F.normalize(dim=1, eps=1e-12): x / max(||x||, eps) == x * rsqrt(max(ss, eps^2))
    scale = jax.lax.rsqrt(jnp.maximum(ss, 1e-24)) * INV_SQRT_T
    h_ref[...] = h * scale                                    # (BR, Pp)


# ----------------------------------------------------------------------------
# Kernel B: streaming Gram + online logsumexp + InfoNCE per-row loss
# ----------------------------------------------------------------------------
def _simclr_stream_kernel(hr_ref, hc_ref, hpos_ref, cmask_ref, out_ref, acc_ref,
                          *, block_rows, block_cols, gram_dtype):
    i = pl.program_id(0)
    j = pl.program_id(1)

    @pl.when(j == 0)
    def _():
        acc_ref[...] = jnp.zeros_like(acc_ref)

    hr = hr_ref[...]                                          # (BR, Pp) f32
    # logits tile = (sim / T) for this (row-block, col-block); contract last dims.
    logits = jax.lax.dot_general(
        hr.astype(gram_dtype), hc_ref[...].astype(gram_dtype),
        (((1,), (1,)), ((), ())), preferred_element_type=jnp.float32)  # (BR, BC)

    # Row max over off-diagonal entries is bounded by the constant 1/T
    # (features are unit-norm scaled by 1/sqrt(T)), so use it directly.
    e = jnp.exp(logits - INV_T) * cmask_ref[...]              # mask padded columns
    # Exclude the diagonal exactly (only bites on tiles crossing the diagonal).
    rg = i * block_rows + jax.lax.broadcasted_iota(
        jnp.int32, (block_rows, block_cols), 0)
    cg = j * block_cols + jax.lax.broadcasted_iota(
        jnp.int32, (block_rows, block_cols), 1)
    e = jnp.where(rg == cg, 0.0, e)

    acc_ref[...] += jnp.sum(e, axis=-1, keepdims=True)        # (BR, 1)

    @pl.when(j == pl.num_programs(1) - 1)
    def _():
        # positive logit: dot with the partner row block (other view, same index)
        pos = jnp.sum(hr * hpos_ref[...], axis=-1, keepdims=True)
        out_ref[...] = INV_T + jnp.log(acc_ref[...]) - pos    # lse - pos


# ----------------------------------------------------------------------------
# Wrapper around the two pallas_calls
# ----------------------------------------------------------------------------
def _simclr_loss_pallas(z_pad, w_pad, b_pad, col_mask, row_mask, n_valid,
                        *, block_rows=128, block_cols=128,
                        gram_dtype=jnp.float32):
    two_n_pad, h_pad = z_pad.shape
    p_pad = w_pad.shape[1]
    n_rb = two_n_pad // block_rows
    n_cb = two_n_pad // block_cols
    half_rb = (two_n_pad // 2) // block_rows

    # ---- stage 1: h = normalize(z @ W + b) * (1/sqrt(T)) ----------------------
    cost1 = pl.CostEstimate(
        flops=int(2 * two_n_pad * h_pad * p_pad + 4 * two_n_pad * p_pad),
        transcendentals=int(two_n_pad),
        bytes_accessed=int(4 * (two_n_pad * h_pad + h_pad * p_pad + p_pad
                                + two_n_pad * p_pad)))
    h = pl.pallas_call(
        _project_normalize_kernel,
        out_shape=jax.ShapeDtypeStruct((two_n_pad, p_pad), jnp.float32),
        grid=(n_rb,),
        in_specs=[
            pl.BlockSpec((block_rows, h_pad), lambda i: (i, 0)),
            pl.BlockSpec((h_pad, p_pad), lambda i: (0, 0)),
            pl.BlockSpec((1, p_pad), lambda i: (0, 0)),
        ],
        out_specs=pl.BlockSpec((block_rows, p_pad), lambda i: (i, 0)),
        compiler_params=pltpu.CompilerParams(
            dimension_semantics=("parallel",)),
        cost_estimate=cost1,
    )(z_pad, w_pad, b_pad)

    # ---- stage 2: streaming similarity + online logsumexp + per-row loss ------
    kernel = functools.partial(_simclr_stream_kernel,
                               block_rows=block_rows, block_cols=block_cols,
                               gram_dtype=gram_dtype)
    cost2 = pl.CostEstimate(
        flops=int(2 * two_n_pad * two_n_pad * p_pad + 2 * two_n_pad * p_pad),
        transcendentals=int(two_n_pad * two_n_pad + two_n_pad),
        bytes_accessed=int(4 * ((n_rb + 2) * two_n_pad * p_pad
                                + n_rb * two_n_pad + two_n_pad)))
    row_loss = pl.pallas_call(
        kernel,
        out_shape=jax.ShapeDtypeStruct((two_n_pad, 1), jnp.float32),
        grid=(n_rb, n_cb),
        in_specs=[
            pl.BlockSpec((block_rows, p_pad), lambda i, j: (i, 0)),          # rows
            pl.BlockSpec((block_cols, p_pad), lambda i, j: (j, 0)),          # cols
            pl.BlockSpec((block_rows, p_pad),
                         lambda i, j: ((i + half_rb) % n_rb, 0)),            # partner
            pl.BlockSpec((1, block_cols), lambda i, j: (0, j)),              # col mask
        ],
        out_specs=pl.BlockSpec((block_rows, 1), lambda i, j: (i, 0)),
        scratch_shapes=[pltpu.VMEM((block_rows, 1), jnp.float32)],
        compiler_params=pltpu.CompilerParams(
            dimension_semantics=("parallel", "arbitrary")),
        cost_estimate=cost2,
    )(h, h, h, col_mask)

    # tiny masked mean over the 2N real rows
    loss = jnp.sum(jnp.where(row_mask[:, None] > 0, row_loss, 0.0)) / n_valid
    return loss


# ----------------------------------------------------------------------------
# Plain-JAX glue (encoder stand-in, cls-column gather, padding)
# ----------------------------------------------------------------------------
# TODO(synk): the pretrained RoBERTa encoder (AutoModel) has no clean Pallas
# equivalent; replaced by a deterministic token-embedding lookup (ids -> [B,L,H]).
def _fake_bert(x_ids, emb_table):
    return emb_table[x_ids]


def _extract_column_indices(seq_len, cls_indices):
    # mirrors BarlowTwinsSimCLR._extract_columns with explicit cls_indices
    idx = []
    for rid in range(len(cls_indices)):
        idx += [c + rid * seq_len for c in cls_indices[rid]]
    return np.asarray(idx, dtype=np.int32)


def barlow_twins_simclr_forward(x_ori, x_aug, cls_indices, emb_table, w_proj,
                                b_proj, mode="simclr", *, block_rows=128,
                                block_cols=128, gram_dtype=jnp.float32):
    assert mode == "simclr"
    batch_size, seq_len = x_ori.shape
    x = jnp.concatenate((x_ori, x_aug), axis=0)                # (2B, L)
    z = _fake_bert(x, emb_table)                               # (2B, L, H)
    hdim = z.shape[-1]
    z_flat = z.reshape(2 * batch_size * seq_len, hdim)

    cls_ori, cls_aug = cls_indices
    idx_ori = _extract_column_indices(seq_len, cls_ori)
    idx_aug = _extract_column_indices(seq_len, cls_aug) + batch_size * seq_len
    n = idx_ori.shape[0]
    assert idx_aug.shape[0] == n

    # lane-dense / block-aligned padding
    p = w_proj.shape[1]
    h_pad = _round_up(hdim, 128)
    p_pad = _round_up(p, 128)
    n_pad = _round_up(n, int(np.lcm(block_rows, block_cols)))  # per-view row pad
    two_n_pad = 2 * n_pad

    z_ori_cols = jnp.take(z_flat, jnp.asarray(idx_ori), axis=0)   # (N, H)
    z_aug_cols = jnp.take(z_flat, jnp.asarray(idx_aug), axis=0)   # (N, H)

    def pad_half(zc):
        return jnp.pad(zc, ((0, n_pad - n), (0, h_pad - hdim)))

    z_pad = jnp.concatenate((pad_half(z_ori_cols), pad_half(z_aug_cols)), axis=0)
    w_pad = jnp.pad(w_proj, ((0, h_pad - hdim), (0, p_pad - p)))
    b_pad = jnp.pad(b_proj, (0, p_pad - p)).reshape(1, p_pad)

    valid_half = (np.arange(n_pad) < n).astype(np.float32)
    valid = np.concatenate([valid_half, valid_half])
    col_mask = jnp.asarray(valid.reshape(1, two_n_pad), jnp.float32)
    row_mask = jnp.asarray(valid, jnp.float32)

    return _simclr_loss_pallas(z_pad, w_pad, b_pad, col_mask, row_mask,
                               jnp.float32(2 * n),
                               block_rows=block_rows, block_cols=block_cols,
                               gram_dtype=gram_dtype)


# ----------------------------------------------------------------------------
# Pure-JAX reference (torch semantics) for a silent correctness check
# ----------------------------------------------------------------------------
def _reference_loss(z_cols, w_proj, b_proj):
    h = z_cols @ w_proj + b_proj[None, :]
    h = h / jnp.maximum(jnp.linalg.norm(h, axis=1, keepdims=True), 1e-12)
    sim = h @ h.T
    logits = sim / TEMPERATURE
    two_n = sim.shape[0]
    n = two_n // 2
    eye = jnp.eye(two_n, dtype=bool)
    pos = logits[jnp.arange(two_n), (jnp.arange(two_n) + n) % two_n]
    masked = jnp.where(eye, -jnp.inf, logits)
    lse = jax.scipy.special.logsumexp(masked, axis=1)
    return jnp.mean(lse - pos)


# ----------------------------------------------------------------------------
if __name__ == "__main__":
    key = jax.random.PRNGKey(0)
    B, L, V, H, P = 2, 8, 100, 32, 32  # batch, seq, vocab, hidden, hp.projector
    k1, k2, k3, k4, k5 = jax.random.split(key, 5)

    x_ori = jax.random.randint(k1, (B, L), 0, V, dtype=jnp.int32)
    x_aug = jax.random.randint(k2, (B, L), 0, V, dtype=jnp.int32)

    # deterministic synthetic parameters (not a checkpoint)
    emb_table = jax.random.normal(k3, (V, H), jnp.float32) * 0.02
    w_proj = jax.random.normal(k4, (H, P), jnp.float32) * (1.0 / np.sqrt(H))
    b_proj = jax.random.normal(k5, (P,), jnp.float32) * 0.01

    # cls-token alignment: 2 column vectors per table, per view  ->  N = 4
    cls_ori = [[0, 3], [0, 5]]
    cls_aug = [[0, 2], [0, 4]]

    loss = barlow_twins_simclr_forward(
        x_ori, x_aug, (cls_ori, cls_aug), emb_table, w_proj, b_proj, mode="simclr"
    )
    loss = jax.block_until_ready(loss)

    # silent correctness check against the pure-JAX (torch-semantics) reference
    z = _fake_bert(jnp.concatenate((x_ori, x_aug)), emb_table)
    zf = z.reshape(2 * B * L, H)
    idx_o = _extract_column_indices(L, cls_ori)
    idx_a = _extract_column_indices(L, cls_aug) + B * L
    z_cols = jnp.concatenate((zf[jnp.asarray(idx_o)], zf[jnp.asarray(idx_a)]), axis=0)
    ref = _reference_loss(z_cols, w_proj, b_proj)
    np.testing.assert_allclose(np.asarray(loss), np.asarray(ref),
                               rtol=1e-4, atol=1e-4)

    print("KERNEL_OK")
</pallas_src>

<mosaic_0001>
module attributes {stable_mosaic.version = 11 : i64} {
  func.func @_project_normalize_kernel(%arg0: i32, %arg1: memref<128x128xf32, #tpu.memory_space<vmem>>, %arg2: memref<128x128xf32, #tpu.memory_space<vmem>>, %arg3: memref<1x128xf32, #tpu.memory_space<vmem>>, %arg4: memref<128x128xf32, #tpu.memory_space<vmem>>) attributes {dimension_semantics = [#tpu.dimension_semantics<parallel>], iteration_bounds = array<i64: 2>, scalar_prefetch = 0 : i64, scratch_operands = 0 : i64, tpu.core_type = #tpu.core_type<tc>, window_params = [{transform_indices = @transform_0, window_bounds = array<i64: 128, 128>}, {pipeline_mode = #tpu.pipeline_mode<synchronous>, transform_indices = @transform_1, window_bounds = array<i64: 128, 128>}, {pipeline_mode = #tpu.pipeline_mode<synchronous>, transform_indices = @transform_2, window_bounds = array<i64: 1, 128>}, {transform_indices = @transform_3, window_bounds = array<i64: 128, 128>}]} {
    %c0 = arith.constant 0 : index
    %c0_0 = arith.constant 0 : index
    %0 = vector.load %arg1[%c0, %c0_0] : memref<128x128xf32, #tpu.memory_space<vmem>>, vector<128x128xf32>
    %c0_1 = arith.constant 0 : index
    %c0_2 = arith.constant 0 : index
    %1 = vector.load %arg2[%c0_1, %c0_2] : memref<128x128xf32, #tpu.memory_space<vmem>>, vector<128x128xf32>
    %cst = arith.constant dense<0.000000e+00> : vector<128x128xf32>
    %2 = tpu.matmul %0, %1, %cst {dimension_numbers = #tpu.dot_dimension_numbers<[1], [0], [0], [1], [0, 0, 1, 1], [], []>} : vector<128x128xf32>, vector<128x128xf32>, vector<128x128xf32> -> vector<128x128xf32>
    %c0_3 = arith.constant 0 : index
    %c0_4 = arith.constant 0 : index
    %3 = vector.load %arg3[%c0_3, %c0_4] : memref<1x128xf32, #tpu.memory_space<vmem>>, vector<1x128xf32>
    %4 = vector.broadcast %3 : vector<1x128xf32> to vector<128x128xf32>
    %5 = arith.addf %2, %4 : vector<128x128xf32>
    %6 = arith.mulf %5, %5 : vector<128x128xf32>
    %cst_5 = arith.constant dense<0.000000e+00> : vector<128xf32>
    %7 = vector.multi_reduction <add>, %6, %cst_5 [1] : vector<128x128xf32> to vector<128xf32>
    %8 = vector.shape_cast %7 : vector<128xf32> to vector<128x1xf32>
    %cst_6 = arith.constant 1.000000e-24 : f32
    %9 = vector.broadcast %cst_6 : f32 to vector<128x1xf32>
    %10 = arith.maximumf %8, %9 : vector<128x1xf32>
    %11 = math.rsqrt %10 : vector<128x1xf32>
    %cst_7 = arith.constant 3.77964473 : f32
    %12 = vector.broadcast %cst_7 : f32 to vector<128x1xf32>
    %13 = arith.mulf %11, %12 : vector<128x1xf32>
    %14 = vector.broadcast %13 : vector<128x1xf32> to vector<128x128xf32>
    %15 = arith.mulf %5, %14 : vector<128x128xf32>
    %c0_8 = arith.constant 0 : index
    %c0_9 = arith.constant 0 : index
    %16 = vector.load %arg4[%c0_8, %c0_9] : memref<128x128xf32, #tpu.memory_space<vmem>>, vector<128x128xf32>
    tpu.vector_store %arg4[%c0_8, %c0_9], %15 {strides = array<i32>} : memref<128x128xf32, #tpu.memory_space<vmem>>, vector<128x128xf32>,
    return
  }
  func.func @transform_0(%arg0: i32) -> (i32, i32) {
    %c0_i32 = arith.constant 0 : i32
    %c0_i32_0 = arith.constant 0 : i32
    return %arg0, %c0_i32 : i32, i32
  }
  func.func @transform_1(%arg0: i32) -> (i32, i32) {
    %c0_i32 = arith.constant 0 : i32
    %c0_i32_0 = arith.constant 0 : i32
    %c0_i32_1 = arith.constant 0 : i32
    return %c0_i32, %c0_i32_0 : i32, i32
  }
  func.func @transform_2(%arg0: i32) -> (i32, i32) {
    %c0_i32 = arith.constant 0 : i32
    %c0_i32_0 = arith.constant 0 : i32
    %c0_i32_1 = arith.constant 0 : i32
    return %c0_i32, %c0_i32_0 : i32, i32
  }
  func.func @transform_3(%arg0: i32) -> (i32, i32) {
    %c0_i32 = arith.constant 0 : i32
    %c0_i32_0 = arith.constant 0 : i32
    return %arg0, %c0_i32 : i32, i32
  }
}

</mosaic_0001>

<llo_original>
// kernel: tpu_custom_call.1
$region0: #{tpu_custom_call.1}
  #allocation0 [shape = 'u32[]', space=smem, size = 0x4, offset = 0x4, fixed_abs, tag = 'smem constant byte address 0x4 - core index']
  #allocation1 [shape = 'u32[144,128]{1,0:T(1,128)}', space=vmem, size = 0x12000, scoped, tag = 'internal scratch']
  %s0 = inlined_call_operand.hbm [shape: f32[256,128], index: 0, kind: input, shape index: {}]
  %s1 = inlined_call_operand.hbm [shape: f32[128,128], index: 1, kind: input, shape index: {}]
  %s2 = inlined_call_operand.vmem [shape: f32[1,128], index: 2, kind: input, shape index: {}]
  %s3 = inlined_call_operand.hbm [shape: f32[256,128], index: 3, kind: output, shape index: {}]
  %s4 = sld [smem:[#allocation0]]
  $region53: #{tpu_custom_call.1} parent=0
    _
  %s6 = ssub.s32 1, %s4
  %s7 = scalar_select 0, %s6, %s4
  $region1: #{tpu_custom_call.1} parent=0
    #allocation2 [shape = 'u8[131072]{0}', space=vmem, size = 0x20000, scoped, tag = 'input window, operand 0']
    #allocation3 [shape = 's32[2]{0}', space=sflag, size = 0x8, scoped, tag = 'scoped memory for tpu_custom_call.1']
    #allocation4 [shape = 's32[2]{0}', space=sflag, size = 0x8, scoped, tag = 'scoped memory for tpu_custom_call.1']
    #allocation5 [shape = 'u8[65536]{0}', space=vmem, size = 0x10000, scoped, tag = 'input window, operand 1, single buffered']
    #allocation6 [shape = 's32[1]{0}', space=sflag, size = 0x4, scoped, tag = 'scoped memory for tpu_custom_call.1']
    #allocation7 [shape = 'u8[131072]{0}', space=vmem, size = 0x20000, scoped, tag = 'output window, operand 0']
    %8 = vsyncpa [#allocation3], 0
    %s9 = scalar_lea.sflag [#allocation3], 1
    %10 = vsyncpa %s9, 0
    %11 = vsyncpa [#allocation6], 0
    %12 = vsyncpa [#allocation4], 0
    %s13 = scalar_lea.sflag [#allocation4], 1
    %14 = vsyncpa %s13, 0
    loop: start=0, step=1, limit=4
    $region2: #{tpu_custom_call.1} parent=1 // loop_pre_header
      _
    $region3: #{tpu_custom_call.1} parent=1 // loop_header
      %s16 = sphi 0, %s20
      %p17 = scmp.ge.s32.totalorder %s16, 4
      %s26 = sphi 0, %s28
      %s29 = sphi 0, %s26
      %s30 = sphi 0, %s29
      %s46 = sphi 0, %s30
      %s50 = sphi 0, %s50
      %s52 = sphi 0, %s50
      %s53 = sphi 0, %s52
      %s67 = sphi 0, %s53
      %s71 = sphi 0, %s71
      %s73 = sphi 0, %s71
      %s74 = sphi 0, %s73
      %s88 = sphi 0, %s74
      %s94 = sphi 0, %s96
      %s97 = sphi 0, %s94
      %s98 = sphi 0, %s97
      %s114 = sphi 0, %s98
    $region4: #{tpu_custom_call.1} parent=1 // loop_header_branch
      %19 = sbr.rel (%p17) target = $region8
    $region5: #{tpu_custom_call.1} parent=1 // loop_body
      %s21 = ssub.s32 %s16, 1
      %s22 = ssub.s32 %s16, 2
      %s23 = sadd.s32 %s16, 1
      %s24 = ssub.s32 %s16, %s23
      %p25 = scmp.eq.s32.totalorder %s24, 0
      %s27 = sadd.s32 %s26, 1
      %s28 = scalar_select %p25, %s26, %s27
      %p31 = pneg %p25
      %p32 = scmp.eq.s32.totalorder %s16, 1
      %p33 = por %p31, %p32
      %p34 = scmp.ne.s32.totalorder %s26, %s29
      %p35 = scmp.eq.s32.totalorder %s16, 0
      %p36 = por %p34, %p35
      %p37 = scmp.ne.s32.totalorder %s26, %s29
      %p38 = scmp.eq.s32.totalorder %s21, 1
      %p39 = por %p37, %p38
      %p40 = scmp.ne.s32.totalorder %s29, %s30
      %p41 = scmp.eq.s32.totalorder %s21, 0
      %p42 = por %p40, %p41
      %p43 = scmp.ne.s32.totalorder %s29, %s30
      %p44 = scmp.eq.s32.totalorder %s22, 1
      %p45 = por %p43, %p44
      %p47 = scmp.ne.s32.totalorder %s30, %s46
      %p48 = scmp.eq.s32.totalorder %s22, 0
      %p49 = por %p47, %p48
      %s51 = sadd.s32 %s50, 1
      %p54 = scmp.eq.s32.totalorder %s16, 1
      %p55 = scmp.ne.s32.totalorder %s50, %s52
      %p56 = scmp.eq.s32.totalorder %s16, 0
      %p57 = por %p55, %p56
      %p58 = scmp.ne.s32.totalorder %s50, %s52
      %p59 = scmp.eq.s32.totalorder %s21, 1
      %p60 = por %p58, %p59
      %p61 = scmp.ne.s32.totalorder %s52, %s53
      %p62 = scmp.eq.s32.totalorder %s21, 0
      %p63 = por %p61, %p62
      %p64 = scmp.ne.s32.totalorder %s52, %s53
      %p65 = scmp.eq.s32.totalorder %s22, 1
      %p66 = por %p64, %p65
      %p68 = scmp.ne.s32.totalorder %s53, %s67
      %p69 = scmp.eq.s32.totalorder %s22, 0
      %p70 = por %p68, %p69
      %s72 = sadd.s32 %s71, 1
      %p75 = scmp.eq.s32.totalorder %s16, 1
      %p76 = scmp.ne.s32.totalorder %s71, %s73
      %p77 = scmp.eq.s32.totalorder %s16, 0
      %p78 = por %p76, %p77
      %p79 = scmp.ne.s32.totalorder %s71, %s73
      %p80 = scmp.eq.s32.totalorder %s21, 1
      %p81 = por %p79, %p80
      %p82 = scmp.ne.s32.totalorder %s73, %s74
      %p83 = scmp.eq.s32.totalorder %s21, 0
      %p84 = por %p82, %p83
      %p85 = scmp.ne.s32.totalorder %s73, %s74
      %p86 = scmp.eq.s32.totalorder %s22, 1
      %p87 = por %p85, %p86
      %p89 = scmp.ne.s32.totalorder %s74, %s88
      %p90 = scmp.eq.s32.totalorder %s22, 0
      %p91 = por %p89, %p90
      %s92 = ssub.s32 %s16, %s23
      %p93 = scmp.eq.s32.totalorder %s92, 0
      %s95 = sadd.s32 %s94, 1
      %s96 = scalar_select %p93, %s94, %s95
      %p99 = pneg %p93
      %p100 = scmp.eq.s32.totalorder %s16, 1
      %p101 = por %p99, %p100
      %p102 = scmp.ne.s32.totalorder %s94, %s97
      %p103 = scmp.eq.s32.totalorder %s16, 0
      %p104 = por %p102, %p103
      %p105 = scmp.ne.s32.totalorder %s94, %s97
      %p106 = scmp.eq.s32.totalorder %s21, 1
      %p107 = por %p105, %p106
      %p108 = scmp.ne.s32.totalorder %s97, %s98
      %p109 = scmp.eq.s32.totalorder %s21, 0
      %p110 = por %p108, %p109
      %p111 = scmp.ne.s32.totalorder %s97, %s98
      %p112 = scmp.eq.s32.totalorder %s22, 1
      %p113 = por %p111, %p112
      %p115 = scmp.ne.s32.totalorder %s98, %s114
      %p116 = scmp.eq.s32.totalorder %s22, 0
      %p117 = por %p115, %p116
      %p118 = scmp.le.s32.totalorder 1, %s16
      %p119 = scmp.lt.s32.totalorder %s16, 3
      %p120 = pnand %p118, %p119
      %p121 = pneg %p120
      // Predicated region
      $region9: #{tpu_custom_call.1} parent=5 // pred_check
        _
      $region10: #{tpu_custom_call.1} parent=5 // pred_check_branch
        %123 = sbr.rel (%p120) target = $region12
      $region11: #{tpu_custom_call.1} parent=5 // pred_region
        %s124 = ssub.s32 %s16, 1
        // Predicated region
        $region13: #{tpu_custom_call.1} parent=11 // pred_check
          %p125 = pneg %p63
        $region14: #{tpu_custom_call.1} parent=11 // pred_check_branch
          %127 = sbr.rel (%p125) target = $region16
        $region15: #{tpu_custom_call.1} parent=11 // pred_region
          %s129 = ssub.s32 2048, 2048
          %130 = vsyncadd [#allocation6], %s129
          %s131 = sshll.u32 [#allocation5], 4
          %s132 = int_to_ptr.vmem [resolvable:$true] %s131
          %137 = dma.hbm_to_vmem [thread:$0]  %s1, 2048, %s132, [#allocation6], 128, 128, 8
        $region16: #{tpu_custom_call.1} parent=11 // pred_fallthru
          _
        // Predicated region
        $region17: #{tpu_custom_call.1} parent=11 // pred_check
          %p138 = pneg %p84
        $region18: #{tpu_custom_call.1} parent=11 // pred_check_branch
          %140 = sbr.rel (%p138) target = $region20
        $region19: #{tpu_custom_call.1} parent=11 // pred_region
          _
        $region20: #{tpu_custom_call.1} parent=11 // pred_fallthru
          _
      $region12: #{tpu_custom_call.1} parent=5 // pred_fallthru
        _
      %p141 = scmp.lt.s32.totalorder %s16, 2
      // Predicated region
      $region21: #{tpu_custom_call.1} parent=5 // pred_check
        %p142 = pneg %p141
      $region22: #{tpu_custom_call.1} parent=5 // pred_check_branch
        %144 = sbr.rel (%p142) target = $region24
      $region23: #{tpu_custom_call.1} parent=5 // pred_region
        // Predicated region
        $region25: #{tpu_custom_call.1} parent=23 // pred_check
          %p145 = pneg %p36
        $region26: #{tpu_custom_call.1} parent=23 // pred_check_branch
          %147 = sbr.rel (%p145) target = $region28
        $region27: #{tpu_custom_call.1} parent=23 // pred_region
          %s148 = sand.u32 %s26, 1
          %s149 = scalar_lea.sflag [#allocation3], %s148
          %s150 = sand.u32 %s26, 1
          %s151 = smul.addr %s150, 128
          %s152 = scalar_lea.vmem [#allocation2], %s151
          %s153 = smul.u32 16, %s16
          %s155 = ssub.s32 2048, 2048
          %156 = vsyncadd %s149, %s155
          %s157 = smul.addr %s153, 128
          %s158 = scalar_lea.hbm %s0, %s157
          %s159 = sshll.u32 %s152, 4
          %s160 = int_to_ptr.vmem [resolvable:$true] %s159
          %165 = dma.hbm_to_vmem [thread:$0]  %s158, 2048, %s160, %s149, 128, 128, 8
        $region28: #{tpu_custom_call.1} parent=23 // pred_fallthru
          _
      $region24: #{tpu_custom_call.1} parent=5 // pred_fallthru
        _
      %p166 = scmp.le.s32.totalorder 1, %s16
      %p167 = scmp.lt.s32.totalorder %s16, 3
      %p168 = pnand %p166, %p167
      %p169 = pneg %p168
      // Predicated region
      $region29: #{tpu_custom_call.1} parent=5 // pred_check
        _
      $region30: #{tpu_custom_call.1} parent=5 // pred_check_branch
        %171 = sbr.rel (%p168) target = $region32
      $region31: #{tpu_custom_call.1} parent=5 // pred_region
        %s172 = ssub.s32 %s16, 1
        %s173 = sand.u32 %s29, 1
        %s174 = scalar_lea.sflag [#allocation3], %s173
        %s175 = sand.u32 %s29, 1
        %s176 = smul.addr %s175, 128
        %s177 = scalar_lea.vmem [#allocation2], %s176
        // Predicated region
        $region33: #{tpu_custom_call.1} parent=31 // pred_check
          %p178 = pneg %p42
        $region34: #{tpu_custom_call.1} parent=31 // pred_check_branch
          %180 = sbr.rel (%p178) target = $region36
        $region35: #{tpu_custom_call.1} parent=31 // pred_region
          %181 = dma.done %s174, 2048
        $region36: #{tpu_custom_call.1} parent=31 // pred_fallthru
          _
        // Predicated region
        $region37: #{tpu_custom_call.1} parent=31 // pred_check
          %p182 = pneg %p63
        $region38: #{tpu_custom_call.1} parent=31 // pred_check_branch
          %184 = sbr.rel (%p182) target = $region40
        $region39: #{tpu_custom_call.1} parent=31 // pred_region
          %185 = dma.done [#allocation6], 2048
        $region40: #{tpu_custom_call.1} parent=31 // pred_fallthru
          _
        %s186 = sand.u32 %s29, 1
        %s187 = scalar_lea.sflag [#allocation3], %s186
        %s188 = sand.u32 %s29, 1
        %s189 = smul.addr %s188, 128
        %s190 = scalar_lea.vmem [#allocation2], %s189
        %p191 = pneg %p42
        %p192 = pneg %p39
        %p193 = pneg %p63
        %p194 = pneg %p60
        %p195 = pneg %p84
        %p196 = pneg %p81
        %p197 = pneg %p110
        %p198 = pneg %p107
        %s199 = sand.u32 %s97, 1
        %s200 = scalar_lea.sflag [#allocation4], %s199
        %s201 = sand.u32 %s97, 1
        %s202 = smul.addr %s201, 128
        %s203 = scalar_lea.vmem [#allocation7], %s202
        %s204 = smul.u32 16, %s21
        %s205 = smul.u32 16, %s21
        %v206 = vld [vmem:[%s177] sm:$0xff]
        %v207 = vld [vmem:[%s177 + $0x8] sm:$0xff]
        %v208 = vld [vmem:[%s177 + $0x10] sm:$0xff]
        %v209 = vld [vmem:[%s177 + $0x18] sm:$0xff]
        %v210 = vld [vmem:[%s177 + $0x20] sm:$0xff]
        %v211 = vld [vmem:[%s177 + $0x28] sm:$0xff]
        %v212 = vld [vmem:[%s177 + $0x30] sm:$0xff]
        %v213 = vld [vmem:[%s177 + $0x38] sm:$0xff]
        %v214 = vld [vmem:[%s177 + $0x40] sm:$0xff]
        %v215 = vld [vmem:[%s177 + $0x48] sm:$0xff]
        %v216 = vld [vmem:[%s177 + $0x50] sm:$0xff]
        %v217 = vld [vmem:[%s177 + $0x58] sm:$0xff]
        %v218 = vld [vmem:[%s177 + $0x60] sm:$0xff]
        %v219 = vld [vmem:[%s177 + $0x68] sm:$0xff]
        %v220 = vld [vmem:[%s177 + $0x70] sm:$0xff]
        %v221 = vld [vmem:[%s177 + $0x78] sm:$0xff]
        %v222 = vld [vmem:[#allocation5] sm:$0xff]
        %v223 = vld [vmem:[#allocation5 + $0x8] sm:$0xff]
        %v224 = vld [vmem:[#allocation5 + $0x10] sm:$0xff]
        %v225 = vld [vmem:[#allocation5 + $0x18] sm:$0xff]
        %v226 = vld [vmem:[#allocation5 + $0x20] sm:$0xff]
        %v227 = vld [vmem:[#allocation5 + $0x28] sm:$0xff]
        %v228 = vld [vmem:[#allocation5 + $0x30] sm:$0xff]
        %v229 = vld [vmem:[#allocation5 + $0x38] sm:$0xff]
        %v230 = vld [vmem:[#allocation5 + $0x40] sm:$0xff]
        %v231 = vld [vmem:[#allocation5 + $0x48] sm:$0xff]
        %v232 = vld [vmem:[#allocation5 + $0x50] sm:$0xff]
        %v233 = vld [vmem:[#allocation5 + $0x58] sm:$0xff]
        %v234 = vld [vmem:[#allocation5 + $0x60] sm:$0xff]
        %v235 = vld [vmem:[#allocation5 + $0x68] sm:$0xff]
        %v236 = vld [vmem:[#allocation5 + $0x70] sm:$0xff]
        %v237 = vld [vmem:[#allocation5 + $0x78] sm:$0xff]
        %v238 = vld [vmem:[%s2] sm:$0x1]
        %v240 = vlaneseq
        %v241 = vshrl.u32 %v240, 7
        %v242 = vsub.s32 0, %v241
        %v243 = vrot.slane %v238, %v242
        %245 = vmatprep.subr.mxu0 0.0
        %246 = vmatpush1.msra.mxu0 %v222
        %247 = vmatprep.subr.mxu0 0.0
        %248 = vmatpush1.msra.mxu0 %v223
        %249 = vmatprep.subr.mxu0 0.0
        %250 = vmatpush1.msra.mxu0 %v224
        %251 = vmatprep.subr.mxu0 0.0
        %252 = vmatpush1.msra.mxu0 %v225
        %253 = vmatprep.subr.mxu0 0.0
        %254 = vmatpush1.msra.mxu0 %v226
        %255 = vmatprep.subr.mxu0 0.0
        %256 = vmatpush1.msra.mxu0 %v227
        %257 = vmatprep.subr.mxu0 0.0
        %258 = vmatpush1.msra.mxu0 %v228
        %259 = vmatprep.subr.mxu0 0.0
        %260 = vmatpush1.msra.mxu0 %v229
        %261 = vmatprep.subr.mxu0 0.0
        %262 = vmatpush1.msra.mxu0 %v230
        %263 = vmatprep.subr.mxu0 0.0
        %264 = vmatpush1.msra.mxu0 %v231
        %265 = vmatprep.subr.mxu0 0.0
        %266 = vmatpush1.msra.mxu0 %v232
        %267 = vmatprep.subr.mxu0 0.0
        %268 = vmatpush1.msra.mxu0 %v233
        %269 = vmatprep.subr.mxu0 0.0
        %270 = vmatpush1.msra.mxu0 %v234
        %271 = vmatprep.subr.mxu0 0.0
        %272 = vmatpush1.msra.mxu0 %v235
        %273 = vmatprep.subr.mxu0 0.0
        %274 = vmatpush1.msra.mxu0 %v236
        %275 = vmatprep.subr.mxu0 0.0
        %276 = vmatpush1.msra.mxu0 %v237
        %277 = vmatprep.subr.mxu0 0.0
        %278 = vmatpush1.msra.mxu0 0.0
        %279 = vmatprep.subr.mxu0 0.0
        %280 = vmatpush1.msra.mxu0 0.0
        %281 = vmatprep.subr.mxu0 0.0
        %282 = vmatpush1.msra.mxu0 0.0
        %283 = vmatprep.subr.mxu0 0.0
        %284 = vmatpush1.msra.mxu0 0.0
        %285 = vmatprep.subr.mxu0 0.0
        %286 = vmatpush1.msra.mxu0 0.0
        %287 = vmatprep.subr.mxu0 0.0
        %288 = vmatpush1.msra.mxu0 0.0
        %289 = vmatprep.subr.mxu0 0.0
        %290 = vmatpush1.msra.mxu0 0.0
        %291 = vmatprep.subr.mxu0 0.0
        %292 = vmatpush1.msra.mxu0 0.0
        %293 = vmatprep.subr.mxu0 0.0
        %294 = vmatpush1.msra.mxu0 0.0
        %295 = vmatprep.subr.mxu0 0.0
        %296 = vmatpush1.msra.mxu0 0.0
        %297 = vmatprep.subr.mxu0 0.0
        %298 = vmatpush1.msra.mxu0 0.0
        %299 = vmatprep.subr.mxu0 0.0
        %300 = vmatpush1.msra.mxu0 0.0
        %301 = vmatprep.subr.mxu0 0.0
        %302 = vmatpush1.msra.mxu0 0.0
        %303 = vmatprep.subr.mxu0 0.0
        %304 = vmatpush1.msra.mxu0 0.0
        %305 = vmatprep.subr.mxu0 0.0
        %306 = vmatpush1.msra.mxu0 0.0
        %307 = vmatprep.subr.mxu0 0.0
        %308 = vmatpush1.msra.mxu0 0.0
        %309 = vmatprep.mubr.f32.mxu0 0.0
        %310 = vmatmul.mubr.f32.gmra.mrb[0].mxu0 %v206
        %v311 = vpop.f32.mrb[0].mxu0
        %v312 = vadd.f32 %v243, %v311
        %v313 = vpop.f32.mrb[0].mxu0
        %314 = vmatprep.mubr.f32.mxu0 0.0
        %315 = vmatmul.mubr.f32.gmra.mrb[0].mxu0 %v207
        %v316 = vpop.f32.mrb[0].mxu0
        %v317 = vadd.f32 %v243, %v316
        %v318 = vpop.f32.mrb[0].mxu0
        %319 = vmatprep.mubr.f32.mxu0 0.0
        %320 = vmatmul.mubr.f32.gmra.mrb[0].mxu0 %v208
        %v321 = vpop.f32.mrb[0].mxu0
        %v322 = vadd.f32 %v243, %v321
        %v323 = vpop.f32.mrb[0].mxu0
        %324 = vmatprep.mubr.f32.mxu0 0.0
        %325 = vmatmul.mubr.f32.gmra.mrb[0].mxu0 %v209
        %v326 = vpop.f32.mrb[0].mxu0
        %v327 = vadd.f32 %v243, %v326
        %v328 = vpop.f32.mrb[0].mxu0
        %329 = vmatprep.mubr.f32.mxu0 0.0
        %330 = vmatmul.mubr.f32.gmra.mrb[0].mxu0 %v210
        %v331 = vpop.f32.mrb[0].mxu0
        %v332 = vadd.f32 %v243, %v331
        %v333 = vpop.f32.mrb[0].mxu0
        %334 = vmatprep.mubr.f32.mxu0 0.0
        %335 = vmatmul.mubr.f32.gmra.mrb[0].mxu0 %v211
        %v336 = vpop.f32.mrb[0].mxu0
        %v337 = vadd.f32 %v243, %v336
        %v338 = vpop.f32.mrb[0].mxu0
        %339 = vmatprep.mubr.f32.mxu0 0.0
        %340 = vmatmul.mubr.f32.gmra.mrb[0].mxu0 %v212
        %v341 = vpop.f32.mrb[0].mxu0
        %v342 = vadd.f32 %v243, %v341
        %v343 = vpop.f32.mrb[0].mxu0
        %344 = vmatprep.mubr.f32.mxu0 0.0
        %345 = vmatmul.mubr.f32.gmra.mrb[0].mxu0 %v213
        %v346 = vpop.f32.mrb[0].mxu0
        %v347 = vadd.f32 %v243, %v346
        %v348 = vpop.f32.mrb[0].mxu0
        %349 = vmatprep.mubr.f32.mxu0 0.0
        %350 = vmatmul.mubr.f32.gmra.mrb[0].mxu0 %v214
        %v351 = vpop.f32.mrb[0].mxu0
        %v352 = vadd.f32 %v243, %v351
        %v353 = vpop.f32.mrb[0].mxu0
        %354 = vmatprep.mubr.f32.mxu0 0.0
        %355 = vmatmul.mubr.f32.gmra.mrb[0].mxu0 %v215
        %v356 = vpop.f32.mrb[0].mxu0
        %v357 = vadd.f32 %v243, %v356
        %v358 = vpop.f32.mrb[0].mxu0
        %359 = vmatprep.mubr.f32.mxu0 0.0
        %360 = vmatmul.mubr.f32.gmra.mrb[0].mxu0 %v216
        %v361 = vpop.f32.mrb[0].mxu0
        %v362 = vadd.f32 %v243, %v361
        %v363 = vpop.f32.mrb[0].mxu0
        %364 = vmatprep.mubr.f32.mxu0 0.0
        %365 = vmatmul.mubr.f32.gmra.mrb[0].mxu0 %v217
        %v366 = vpop.f32.mrb[0].mxu0
        %v367 = vadd.f32 %v243, %v366
        %v368 = vpop.f32.mrb[0].mxu0
        %369 = vmatprep.mubr.f32.mxu0 0.0
        %370 = vmatmul.mubr.f32.gmra.mrb[0].mxu0 %v218
        %v371 = vpop.f32.mrb[0].mxu0
        %v372 = vadd.f32 %v243, %v371
        %v373 = vpop.f32.mrb[0].mxu0
        %374 = vmatprep.mubr.f32.mxu0 0.0
        %375 = vmatmul.mubr.f32.gmra.mrb[0].mxu0 %v219
        %v376 = vpop.f32.mrb[0].mxu0
        %v377 = vadd.f32 %v243, %v376
        %v378 = vpop.f32.mrb[0].mxu0
        %379 = vmatprep.mubr.f32.mxu0 0.0
        %380 = vmatmul.mubr.f32.gmra.mrb[0].mxu0 %v220
        %v381 = vpop.f32.mrb[0].mxu0
        %v382 = vadd.f32 %v243, %v381
        %v383 = vpop.f32.mrb[0].mxu0
        %384 = vmatprep.mubr.f32.mxu0 0.0
        %385 = vmatmul.mubr.f32.gmra.mrb[0].mxu0 %v221
        %v386 = vpop.f32.mrb[0].mxu0
        %v387 = vadd.f32 %v243, %v386
        %v388 = vpop.f32.mrb[0].mxu0
        %389 = vdwg.mxu0
        %v390 = vmul.f32 %v312, %v312
        %v391 = vmul.f32 %v317, %v317
        %v392 = vmul.f32 %v322, %v322
        %v393 = vmul.f32 %v327, %v327
        %v394 = vmul.f32 %v332, %v332
        %v395 = vmul.f32 %v337, %v337
        %v396 = vmul.f32 %v342, %v342
        %v397 = vmul.f32 %v347, %v347
        %v398 = vmul.f32 %v352, %v352
        %v399 = vmul.f32 %v357, %v357
        %v400 = vmul.f32 %v362, %v362
        %v401 = vmul.f32 %v367, %v367
        %v402 = vmul.f32 %v372, %v372
        %v403 = vmul.f32 %v377, %v377
        %v404 = vmul.f32 %v382, %v382
        %v405 = vmul.f32 %v387, %v387
        %406 = vadd.xlane.f32.xlu0 %v390
        %v407 = vpop.xlane.xlu0 %406
        %408 = vadd.xlane.f32.xlu0 %v391
        %v409 = vpop.xlane.xlu0 %408
        %410 = vadd.xlane.f32.xlu0 %v392
        %v411 = vpop.xlane.xlu0 %410
        %412 = vadd.xlane.f32.xlu0 %v393
        %v413 = vpop.xlane.xlu0 %412
        %414 = vadd.xlane.f32.xlu0 %v394
        %v415 = vpop.xlane.xlu0 %414
        %416 = vadd.xlane.f32.xlu0 %v395
        %v417 = vpop.xlane.xlu0 %416
        %418 = vadd.xlane.f32.xlu0 %v396
        %v419 = vpop.xlane.xlu0 %418
        %420 = vadd.xlane.f32.xlu0 %v397
        %v421 = vpop.xlane.xlu0 %420
        %422 = vadd.xlane.f32.xlu0 %v398
        %v423 = vpop.xlane.xlu0 %422
        %424 = vadd.xlane.f32.xlu0 %v399
        %v425 = vpop.xlane.xlu0 %424
        %426 = vadd.xlane.f32.xlu0 %v400
        %v427 = vpop.xlane.xlu0 %426
        %428 = vadd.xlane.f32.xlu0 %v401
        %v429 = vpop.xlane.xlu0 %428
        %430 = vadd.xlane.f32.xlu0 %v402
        %v431 = vpop.xlane.xlu0 %430
        %432 = vadd.xlane.f32.xlu0 %v403
        %v433 = vpop.xlane.xlu0 %432
        %434 = vadd.xlane.f32.xlu0 %v404
        %v435 = vpop.xlane.xlu0 %434
        %436 = vadd.xlane.f32.xlu0 %v405
        %v437 = vpop.xlane.xlu0 %436
        %v438 = vmax.f32 %v407, 1e-24
        %v439 = vmax.f32 %v409, 1e-24
        %v440 = vmax.f32 %v411, 1e-24
        %v441 = vmax.f32 %v413, 1e-24
        %v442 = vmax.f32 %v415, 1e-24
        %v443 = vmax.f32 %v417, 1e-24
        %v444 = vmax.f32 %v419, 1e-24
        %v445 = vmax.f32 %v421, 1e-24
        %v446 = vmax.f32 %v423, 1e-24
        %v447 = vmax.f32 %v425, 1e-24
        %v448 = vmax.f32 %v427, 1e-24
        %v449 = vmax.f32 %v429, 1e-24
        %v450 = vmax.f32 %v431, 1e-24
        %v451 = vmax.f32 %v433, 1e-24
        %v452 = vmax.f32 %v435, 1e-24
        %v453 = vmax.f32 %v437, 1e-24
        %v454 = vrsqrt.pop %v438
        %v455 = vrsqrt.pop %v439
        %v456 = vrsqrt.pop %v440
        %v457 = vrsqrt.pop %v441
        %v458 = vrsqrt.pop %v442
        %v459 = vrsqrt.pop %v443
        %v460 = vrsqrt.pop %v444
        %v461 = vrsqrt.pop %v445
        %v462 = vrsqrt.pop %v446
        %v463 = vrsqrt.pop %v447
        %v464 = vrsqrt.pop %v448
        %v465 = vrsqrt.pop %v449
        %v466 = vrsqrt.pop %v450
        %v467 = vrsqrt.pop %v451
        %v468 = vrsqrt.pop %v452
        %v469 = vrsqrt.pop %v453
        %v470 = vmul.f32 %v454, 3.7796447
        %v471 = vmul.f32 %v455, 3.7796447
        %v472 = vmul.f32 %v456, 3.7796447
        %v473 = vmul.f32 %v457, 3.7796447
        %v474 = vmul.f32 %v458, 3.7796447
        %v475 = vmul.f32 %v459, 3.7796447
        %v476 = vmul.f32 %v460, 3.7796447
        %v477 = vmul.f32 %v461, 3.7796447
        %v478 = vmul.f32 %v462, 3.7796447
        %v479 = vmul.f32 %v463, 3.7796447
        %v480 = vmul.f32 %v464, 3.7796447
        %v481 = vmul.f32 %v465, 3.7796447
        %v482 = vmul.f32 %v466, 3.7796447
        %v483 = vmul.f32 %v467, 3.7796447
        %v484 = vmul.f32 %v468, 3.7796447
        %v485 = vmul.f32 %v469, 3.7796447
        %v486 = vmul.f32 %v312, %v470
        %v487 = vmul.f32 %v317, %v471
        %v488 = vmul.f32 %v322, %v472
        %v489 = vmul.f32 %v327, %v473
        %v490 = vmul.f32 %v332, %v474
        %v491 = vmul.f32 %v337, %v475
        %v492 = vmul.f32 %v342, %v476
        %v493 = vmul.f32 %v347, %v477
        %v494 = vmul.f32 %v352, %v478
        %v495 = vmul.f32 %v357, %v479
        %v496 = vmul.f32 %v362, %v480
        %v497 = vmul.f32 %v367, %v481
        %v498 = vmul.f32 %v372, %v482
        %v499 = vmul.f32 %v377, %v483
        %v500 = vmul.f32 %v382, %v484
        %v501 = vmul.f32 %v387, %v485
        %502 = vst [vmem:[%s203] sm:$0xff] %v486
        %503 = vst [vmem:[%s203 + $0x8] sm:$0xff] %v487
        %504 = vst [vmem:[%s203 + $0x10] sm:$0xff] %v488
        %505 = vst [vmem:[%s203 + $0x18] sm:$0xff] %v489
        %506 = vst [vmem:[%s203 + $0x20] sm:$0xff] %v490
        %507 = vst [vmem:[%s203 + $0x28] sm:$0xff] %v491
        %508 = vst [vmem:[%s203 + $0x30] sm:$0xff] %v492
        %509 = vst [vmem:[%s203 + $0x38] sm:$0xff] %v493
        %510 = vst [vmem:[%s203 + $0x40] sm:$0xff] %v494
        %511 = vst [vmem:[%s203 + $0x48] sm:$0xff] %v495
        %512 = vst [vmem:[%s203 + $0x50] sm:$0xff] %v496
        %513 = vst [vmem:[%s203 + $0x58] sm:$0xff] %v497
        %514 = vst [vmem:[%s203 + $0x60] sm:$0xff] %v498
        %515 = vst [vmem:[%s203 + $0x68] sm:$0xff] %v499
        %516 = vst [vmem:[%s203 + $0x70] sm:$0xff] %v500
        %517 = vst [vmem:[%s203 + $0x78] sm:$0xff] %v501
        %s518 = sand.u32 %s97, 1
        %s519 = scalar_lea.sflag [#allocation4], %s518
        %s520 = sand.u32 %s97, 1
        %s521 = smul.addr %s520, 128
        %s522 = scalar_lea.vmem [#allocation7], %s521
        // Predicated region
        $region41: #{tpu_custom_call.1} parent=31 // pred_check
          %p523 = pneg %p107
        $region42: #{tpu_custom_call.1} parent=31 // pred_check_branch
          %525 = sbr.rel (%p523) target = $region44
        $region43: #{tpu_custom_call.1} parent=31 // pred_region
          %s526 = smul.u32 16, %s21
          %s528 = ssub.s32 2048, 2048
          %529 = vsyncadd %s519, %s528
          %s530 = smul.addr %s526, 128
          %s531 = scalar_lea.hbm %s3, %s530
          %s532 = sshll.u32 %s522, 4
          %s533 = int_to_ptr.vmem [resolvable:$true] %s532
          %538 = dma.vmem_to_hbm [thread:$0]  %s533, 2048, %s531, %s519, 128, 128, 8
        $region44: #{tpu_custom_call.1} parent=31 // pred_fallthru
          _
      $region32: #{tpu_custom_call.1} parent=5 // pred_fallthru
        _
      %p539 = scmp.le.s32.totalorder 2, %s16
      // Predicated region
      $region45: #{tpu_custom_call.1} parent=5 // pred_check
        %p540 = pneg %p539
      $region46: #{tpu_custom_call.1} parent=5 // pred_check_branch
        %542 = sbr.rel (%p540) target = $region48
      $region47: #{tpu_custom_call.1} parent=5 // pred_region
        %s543 = ssub.s32 %s16, 2
        // Predicated region
        $region49: #{tpu_custom_call.1} parent=47 // pred_check
          %p544 = pneg %p113
        $region50: #{tpu_custom_call.1} parent=47 // pred_check_branch
          %546 = sbr.rel (%p544) target = $region52
        $region51: #{tpu_custom_call.1} parent=47 // pred_region
          %s547 = sand.u32 %s98, 1
          %s548 = scalar_lea.sflag [#allocation4], %s547
          %s549 = sand.u32 %s98, 1
          %s550 = smul.addr %s549, 128
          %s551 = scalar_lea.vmem [#allocation7], %s550
          %552 = dma.done %s548, 2048
        $region52: #{tpu_custom_call.1} parent=47 // pred_fallthru
          _
      $region48: #{tpu_custom_call.1} parent=5 // pred_fallthru
        _
    $region6: #{tpu_custom_call.1} parent=1 // loop_footer
      %s20 = sadd.s32 1, %s16
    $region7: #{tpu_custom_call.1} parent=1 // loop_footer_branch
      %15 = sbr.rel target = $region3
    $region8: #{tpu_custom_call.1} parent=1 // loop_exit
      _
    %553 = vsyncpa [#allocation3], 1
    %s554 = scalar_lea.sflag [#allocation3], 1
    %555 = vsyncpa %s554, 1
    %556 = vsyncpa [#allocation6], 1
    %557 = vsyncpa [#allocation4], 1
    %s558 = scalar_lea.sflag [#allocation4], 1
    %559 = vsyncpa %s558, 1

</llo_original>
